<compile_context>
chip_gen: v7x
topology: tpu7x:2x2x1
jax: 0.10.0
libtpu: 0.0.40
codegen_flags: <defaults>
</compile_context>

<pallas_src>
import numpy as np
import jax
import jax.numpy as jnp
from jax.experimental import pallas as pl
from jax.experimental.pallas import tpu as pltpu


def _round_up(x, m):
    return ((x + m - 1) // m) * m


# -----------------------------------------------------------------------------
# Kernel bodies
# -----------------------------------------------------------------------------
def _make_vmem_kernel(num_tables):
    """Fast path: fused table resident in VMEM, rows gathered with dynamic reads."""

    def kernel(rows_ref, tile_bounds_ref, bag_starts_ref, bag_ends_ref,   # SMEM prefetch
               w_ref,                                                     # VMEM (resident)
               out_ref):                                                  # (TB, W) block
        del tile_bounds_ref                                               # HBM path only
        bt = pl.program_id(0)
        tb, out_w = out_ref.shape
        d = w_ref.shape[1]
        b_pad = bag_starts_ref.shape[0] // num_tables

        # Zero only the padding lanes (if any); every (bag, table) lane slice below is
        # written exactly once, so no full-tile zero-init is needed.
        if out_w > num_tables * d:
            out_ref[:, num_tables * d:] = jnp.zeros(
                (tb, out_w - num_tables * d), dtype=out_ref.dtype)

        zero_row = jnp.zeros((1, d), jnp.float32)          # hoisted (no CSE in loops)

        for t in range(num_tables):                        # static -> static lane offsets
            @pl.loop(0, tb)
            def _bag(b, t=t):
                g = t * b_pad + bt * tb + b                # flat (table, bag) id
                s = bag_starts_ref[g]
                e = bag_ends_ref[g]

                def pos_body(pos, acc):
                    row = rows_ref[pos]                    # validated on host (no clamp)
                    return acc + w_ref[pl.ds(row, 1), :]

                acc = jax.lax.fori_loop(s, e, pos_body, zero_row)
                # Single targeted store per (table, bag): dynamic sublane, static lanes.
                out_ref[pl.ds(b, 1), t * d:(t + 1) * d] = acc.astype(out_ref.dtype)

    return kernel


def _make_hbm_kernel(num_tables, nbuf):
    """Large-table path: table stays in HBM, rows gathered by a deep DMA ring that
    stays full across bag and table boundaries within a bag tile."""

    def kernel(rows_ref, tile_bounds_ref, bag_starts_ref, bag_ends_ref,   # SMEM prefetch
               w_hbm_ref,                                                 # HBM (pl.ANY)
               out_ref,                                                   # (TB, W) block
               rowbuf_ref, sem_ref):                                      # scratch
        bt = pl.program_id(0)
        tb, out_w = out_ref.shape
        d = rowbuf_ref.shape[2]
        b_pad = bag_starts_ref.shape[0] // num_tables
        n_total = w_hbm_ref.shape[0]

        tile_start = tile_bounds_ref[bt]
        tile_end = tile_bounds_ref[bt + 1]
        n_tile = tile_end - tile_start                     # pooled rows in this bag tile

        def row_copy(j):
            """Async-copy descriptor for the j-th pooled row of this tile."""
            pos = tile_start + j
            # Host-side validation raises on OOB (PyTorch semantics); this clamp only
            # prevents a faulting DMA if validation is ever bypassed.
            row = jnp.clip(rows_ref[pos], 0, n_total - 1)
            slot = j & (nbuf - 1)
            return pltpu.make_async_copy(w_hbm_ref.at[pl.ds(row, 1), :],
                                         rowbuf_ref.at[slot],
                                         sem_ref.at[slot])

        # Prime the ring.  INVARIANT: at most NBUF-1 fetches are outstanding; the
        # steady-state prefetch always targets the slot consumed on the *previous*
        # iteration.  Do NOT raise the prefetch distance to NBUF (DMA write would race
        # the previous occupant's vector read).
        for k in range(nbuf - 1):
            @pl.when(k < n_tile)
            def _prime(k=k):
                row_copy(k).start()

        if out_w > num_tables * d:
            out_ref[:, num_tables * d:] = jnp.zeros(
                (tb, out_w - num_tables * d), dtype=out_ref.dtype)

        zero_row = jnp.zeros((1, d), jnp.float32)

        # TODO(synk): manually unroll the pooled-row loop by 4-8 (scalar/DMA-descriptor
        # slot is the binding unit) once trip counts justify the tail handling.
        for t in range(num_tables):                        # static -> static lane offsets
            @pl.loop(0, tb)
            def _bag(b, t=t):
                g = t * b_pad + bt * tb + b
                s = bag_starts_ref[g]
                e = bag_ends_ref[g]

                def pos_body(pos, acc):
                    j = pos - tile_start
                    # Keep the ring full across bag/table boundaries.
                    @pl.when(j + (nbuf - 1) < n_tile)
                    def _prefetch():
                        row_copy(j + (nbuf - 1)).start()
                    row_copy(j).wait()                     # real source slice, not a dummy
                    slot = j & (nbuf - 1)
                    return acc + rowbuf_ref[slot]

                acc = jax.lax.fori_loop(s, e, pos_body, zero_row)
                out_ref[pl.ds(b, 1), t * d:(t + 1) * d] = acc.astype(out_ref.dtype)

    return kernel


# -----------------------------------------------------------------------------
# pallas_call dispatcher
# -----------------------------------------------------------------------------
def _fused_embedding_bag_call(weight, rows, tile_bounds, bag_starts, bag_ends, *,
                              num_tables, tb, out_width, nbuf=8, force_hbm=False,
                              vmem_table_budget_bytes=8 << 20):
    n_total, d = weight.shape
    b_pad = bag_starts.shape[0] // num_tables
    num_tiles = b_pad // tb
    assert b_pad % tb == 0 and tb % 8 == 0 and out_width % 128 == 0
    assert nbuf >= 2 and (nbuf & (nbuf - 1)) == 0, "nbuf must be a power of two >= 2"

    # Budget already accounts for the table being double-buffered by BlockSpec plus the
    # pipelined output blocks: stays well under the default scoped VMEM on all gens
    # (16 MiB v5e, 32 MiB v6e/v7x; v7x physical VMEM is 64 MiB).
    table_bytes = int(n_total) * int(d) * np.dtype(weight.dtype).itemsize
    use_vmem_path = (not force_hbm) and (table_bytes <= vmem_table_budget_bytes)

    out_shape = jax.ShapeDtypeStruct((b_pad, out_width), jnp.float32)
    out_spec = pl.BlockSpec((tb, out_width), lambda bt, *_: (bt, 0))

    if use_vmem_path:
        grid_spec = pltpu.PrefetchScalarGridSpec(
            num_scalar_prefetch=4,
            grid=(num_tiles,),
            # Constant index_map => fused table is DMA'd into VMEM once and stays
            # resident across every bag tile.
            in_specs=[pl.BlockSpec((n_total, d), lambda bt, *_: (0, 0))],
            out_specs=out_spec,
        )
        kernel = _make_vmem_kernel(num_tables)
    else:
        grid_spec = pltpu.PrefetchScalarGridSpec(
            num_scalar_prefetch=4,
            grid=(num_tiles,),
            in_specs=[pl.BlockSpec(memory_space=pl.ANY)],          # table stays in HBM
            out_specs=out_spec,
            scratch_shapes=[pltpu.VMEM((nbuf, 1, d), weight.dtype),  # row-fetch ring
                            pltpu.SemaphoreType.DMA((nbuf,))],
        )
        kernel = _make_hbm_kernel(num_tables, nbuf)

    return pl.pallas_call(
        kernel,
        grid_spec=grid_spec,
        out_shape=out_shape,
        compiler_params=pltpu.CompilerParams(
            dimension_semantics=("parallel",)),                    # bag tiles across TCs
    )(rows, tile_bounds, bag_starts, bag_ends, weight)


# -----------------------------------------------------------------------------
# Module wrapper
# -----------------------------------------------------------------------------
class EmbeddingLayerPallas:
    """JAX/Pallas port of EmbeddingLayer (default, uncompressed EmbeddingBag('sum'))."""

    def __init__(self, embedding_dim, embedding_nums, key):
        # TODO(synk): compression variants (mde/qr/ada/cafe/off/hash) rely on a ctypes
        # sketch library and host-side admission/eviction logic with no clean Pallas
        # equivalent; only the plain nn.EmbeddingBag(mode='sum') forward is implemented.
        self.embedding_dim = int(embedding_dim)
        self.embedding_nums = [int(n) for n in embedding_nums]

        base = [0]
        for n in self.embedding_nums:
            base.append(base[-1] + n)
        self.table_base = base[:-1]                 # row offset of each table
        self.n_total = base[-1]

        keys = jax.random.split(key, len(self.embedding_nums))
        tables = []
        for k, n in zip(keys, self.embedding_nums):
            tmp_n = max(n, 5)
            scale = float(np.sqrt(1.0 / tmp_n))
            tables.append(jax.random.uniform(k, (n, self.embedding_dim),
                                             dtype=jnp.float32,
                                             minval=-scale, maxval=scale))
        # Single fused (N_total, D) f32 table.
        # TODO(synk): optional bf16 storage (keep f32 accumulation) to halve HBM bytes.
        self.weight = jnp.concatenate(tables, axis=0)

    def table_weight(self, k):
        b = self.table_base[k]
        return self.weight[b:b + self.embedding_nums[k]]

    def _build_fused_inputs(self, lS_o, lS_i, tb):
        """Host-side index plumbing: one flat, bag-tile-major row-id stream.

        Position order: [tile0: table0 bags, table1 bags, ...][tile1: ...] so each bag
        tile owns one contiguous position range (tile_bounds) and the HBM path's DMA
        ring stays full across bag AND table boundaries inside a tile.

        TODO(synk): for production L_total (millions of pooled ids) keep `rows` in HBM
        and DMA the per-tile slice into an SMEM scratch each grid step instead of
        scalar-prefetching the whole stream (SMEM 1-D arrays pad to next_pow2 bytes).
        """
        T = len(lS_i)
        offs = [np.asarray(o, dtype=np.int64) for o in lS_o]
        idxs = [np.asarray(i, dtype=np.int64) for i in lS_i]
        B = int(offs[0].shape[0])
        num_tiles = max(1, -(-B // tb))
        b_pad = num_tiles * tb

        # PyTorch EmbeddingBag raises on out-of-range indices; do the same instead of
        # silently clamping an index into a neighbouring fused table.
        for t in range(T):
            n = self.embedding_nums[t]
            if idxs[t].size and (idxs[t].min() < 0 or idxs[t].max() >= n):
                raise IndexError(f"index out of range in table {t} (num_embeddings={n})")

        ends = []
        for t in range(T):
            L = int(idxs[t].shape[0])
            ends.append(np.concatenate([offs[t][1:], np.array([L], dtype=np.int64)]))

        rows_parts = []
        bag_starts = np.zeros(T * b_pad, dtype=np.int32)
        bag_ends = np.zeros(T * b_pad, dtype=np.int32)
        tile_bounds = np.zeros(num_tiles + 1, dtype=np.int32)
        pos = 0
        for bt in range(num_tiles):
            for t in range(T):
                for bl in range(tb):
                    b = bt * tb + bl
                    g = t * b_pad + b
                    bag_starts[g] = pos
                    if b < B:
                        s, e = int(offs[t][b]), int(ends[t][b])
                        if e > s:
                            rows_parts.append(idxs[t][s:e] + self.table_base[t])
                            pos += e - s
                    bag_ends[g] = pos
            tile_bounds[bt + 1] = pos

        rows_all = (np.concatenate(rows_parts).astype(np.int32)
                    if rows_parts else np.zeros((1,), dtype=np.int32))

        return (jnp.asarray(rows_all), jnp.asarray(tile_bounds),
                jnp.asarray(bag_starts), jnp.asarray(bag_ends), B, b_pad)

    def forward(self, lS_o, lS_i, *, tb=256, nbuf=8, force_hbm=False,
                vmem_table_budget_bytes=8 << 20):
        T = len(lS_i)
        D = self.embedding_dim
        B = int(np.asarray(lS_o[0]).shape[0])
        # Big bag tiles amortise the per-grid-step overhead; clamp to the padded batch.
        # For v7x pick tb so that b_pad // tb >= ~8 per TensorCore.
        tb = int(min(_round_up(max(tb, 8), 8), _round_up(B, 8)))
        out_width = _round_up(T * D, 128)          # unmasked, lane-dense writeback

        rows, tile_bounds, bag_starts, bag_ends, B, _ = \
            self._build_fused_inputs(lS_o, lS_i, tb)
        out = _fused_embedding_bag_call(
            self.weight, rows, tile_bounds, bag_starts, bag_ends,
            num_tables=T, tb=tb, out_width=out_width, nbuf=nbuf,
            force_hbm=force_hbm, vmem_table_budget_bytes=vmem_table_budget_bytes)
        # Split the lane-dense (B_pad, W) slab back into the per-table list.
        return [out[:B, t * D:(t + 1) * D] for t in range(T)]


# -----------------------------------------------------------------------------
# Reference + demo
# -----------------------------------------------------------------------------
def _reference_embedding_bag_sum(weight, indices, offsets):
    weight = np.asarray(weight)
    indices = np.asarray(indices)
    offsets = np.asarray(offsets)
    B = offsets.shape[0]
    L = indices.shape[0]
    out = np.zeros((B, weight.shape[1]), dtype=np.float32)
    ends = np.concatenate([offsets[1:], np.array([L])])
    for b in range(B):
        sel = indices[offsets[b]:ends[b]]
        if sel.size:
            out[b] = weight[sel].sum(axis=0)
    return out


def _make_batch(embedding_nums, batch, key):
    lS_i, lS_o = [], []
    keys = jax.random.split(key, 2 * len(embedding_nums))
    for k, n in enumerate(embedding_nums):
        lengths = np.asarray(jax.random.randint(keys[2 * k], (batch,), 0, 5))
        offsets = np.concatenate([[0], np.cumsum(lengths)[:-1]]).astype(np.int32)
        L = int(lengths.sum())
        idx = (jax.random.randint(keys[2 * k + 1], (L,), 0, n, dtype=jnp.int32)
               if L > 0 else jnp.zeros((0,), dtype=jnp.int32))
        lS_i.append(idx)
        lS_o.append(jnp.asarray(offsets, dtype=jnp.int32))
    return lS_o, lS_i


def _check(layer, lS_o, lS_i, outputs, batch):
    for k in range(len(layer.embedding_nums)):
        ref = _reference_embedding_bag_sum(layer.table_weight(k), lS_i[k], lS_o[k])
        np.testing.assert_allclose(np.asarray(outputs[k]), ref, rtol=1e-5, atol=1e-5)
        assert outputs[k].shape == (batch, layer.embedding_dim)
        assert outputs[k].dtype == jnp.float32


if __name__ == "__main__":
    key = jax.random.PRNGKey(0)
    k1, k2, k3, k4 = jax.random.split(key, 4)

    # Case 1: 4 tables x D=32 -> 128 output lanes (no padding); batch 64, TB=16 -> 4
    # parallel bag tiles.  Exercise both the VMEM-resident and the HBM row-DMA path.
    dim1, nums1, batch1 = 32, [60, 100, 40, 80], 64
    layer1 = EmbeddingLayerPallas(dim1, nums1, k1)
    lS_o1, lS_i1 = _make_batch(nums1, batch1, k2)
    out_vmem = [jax.block_until_ready(o) for o in layer1.forward(lS_o1, lS_i1, tb=16)]
    _check(layer1, lS_o1, lS_i1, out_vmem, batch1)
    out_hbm = [jax.block_until_ready(o)
               for o in layer1.forward(lS_o1, lS_i1, tb=16, force_hbm=True)]
    _check(layer1, lS_o1, lS_i1, out_hbm, batch1)

    # Case 2: 3 tables x D=32 -> 96 lanes padded to 128; batch 13 (not a multiple of the
    # bag tile) -> padded bags.  Again exercise both gather paths.
    dim2, nums2, batch2 = 32, [50, 30, 70], 13
    layer2 = EmbeddingLayerPallas(dim2, nums2, k3)
    lS_o2, lS_i2 = _make_batch(nums2, batch2, k4)
    out2_vmem = [jax.block_until_ready(o) for o in layer2.forward(lS_o2, lS_i2, tb=8)]
    _check(layer2, lS_o2, lS_i2, out2_vmem, batch2)
    out2_hbm = [jax.block_until_ready(o)
                for o in layer2.forward(lS_o2, lS_i2, tb=8, force_hbm=True)]
    _check(layer2, lS_o2, lS_i2, out2_hbm, batch2)

    print("KERNEL_OK")
</pallas_src>

<mosaic_0001>
module attributes {stable_mosaic.version = 11 : i64} {
  func.func @kernel(%arg0: i32, %arg1: memref<475xi32, #tpu.memory_space<smem>>, %arg2: memref<5xi32, #tpu.memory_space<smem>>, %arg3: memref<256xi32, #tpu.memory_space<smem>>, %arg4: memref<256xi32, #tpu.memory_space<smem>>, %arg5: memref<280x32xf32, #tpu.memory_space<vmem>>, %arg6: memref<16x128xf32, #tpu.memory_space<vmem>>) attributes {dimension_semantics = [#tpu.dimension_semantics<parallel>], iteration_bounds = array<i64: 4>, scalar_prefetch = 4 : i64, scratch_operands = 0 : i64, tpu.core_type = #tpu.core_type<tc>, window_params = [{pipeline_mode = #tpu.pipeline_mode<synchronous>, transform_indices = @transform_0, window_bounds = array<i64: 280, 32>}, {transform_indices = @transform_1, window_bounds = array<i64: 16, 128>}]} {
    %cst = arith.constant 0.000000e+00 : f32
    %0 = vector.broadcast %cst : f32 to vector<1x32xf32>
    %c0_i32 = arith.constant 0 : i32
    %c16_i32 = arith.constant 16 : i32
    %1 = arith.addi %c0_i32, %c16_i32 : i32
    %c1_i32 = arith.constant 1 : i32
    scf.for %arg7 = %c0_i32 to %1 step %c1_i32  : i32 {
      %c1_i32_13 = arith.constant 1 : i32
      %5 = arith.muli %arg7, %c1_i32_13 : i32
      %c0_i32_14 = arith.constant 0 : i32
      %6 = arith.addi %c0_i32_14, %5 : i32
      %c16_i32_15 = arith.constant 16 : i32
      %7 = arith.muli %arg0, %c16_i32_15 : i32
      %c0_i32_16 = arith.constant 0 : i32
      %8 = arith.addi %c0_i32_16, %7 : i32
      %9 = arith.addi %8, %6 : i32
      %10 = arith.index_cast %9 : i32 to index
      %11 = memref.load %arg3[%10] : memref<256xi32, #tpu.memory_space<smem>>
      %12 = arith.index_cast %9 : i32 to index
      %13 = memref.load %arg4[%12] : memref<256xi32, #tpu.memory_space<smem>>
      %14 = arith.subi %13, %11 : i32
      %15 = arith.addi %11, %14 : i32
      %c1_i32_17 = arith.constant 1 : i32
      %16 = scf.for %arg8 = %11 to %15 step %c1_i32_17 iter_args(%arg9 = %0) -> (vector<1x32xf32>)  : i32 {
        %19 = arith.index_cast %arg8 : i32 to index
        %20 = memref.load %arg1[%19] : memref<475xi32, #tpu.memory_space<smem>>
        %21 = arith.index_cast %20 : i32 to index
        %c0_18 = arith.constant 0 : index
        %22 = vector.load %arg5[%21, %c0_18] : memref<280x32xf32, #tpu.memory_space<vmem>>, vector<1x32xf32>
        %23 = arith.addf %arg9, %22 : vector<1x32xf32>
        scf.yield %23 : vector<1x32xf32>
      }
      %17 = arith.index_cast %6 : i32 to index
      %c0 = arith.constant 0 : index
      %18 = vector.load %arg6[%17, %c0] : memref<16x128xf32, #tpu.memory_space<vmem>>, vector<1x32xf32>
      tpu.vector_store %arg6[%17, %c0], %16 {strides = array<i32>} : memref<16x128xf32, #tpu.memory_space<vmem>>, vector<1x32xf32>,
    }
    %c16_i32_0 = arith.constant 16 : i32
    %c0_i32_1 = arith.constant 0 : i32
    %c16_i32_2 = arith.constant 16 : i32
    %2 = arith.addi %c0_i32_1, %c16_i32_2 : i32
    %c1_i32_3 = arith.constant 1 : i32
    scf.for %arg7 = %c0_i32_1 to %2 step %c1_i32_3  : i32 {
      %c1_i32_13 = arith.constant 1 : i32
      %5 = arith.muli %arg7, %c1_i32_13 : i32
      %c0_i32_14 = arith.constant 0 : i32
      %6 = arith.addi %c0_i32_14, %5 : i32
      %c16_i32_15 = arith.constant 16 : i32
      %7 = arith.muli %arg0, %c16_i32_15 : i32
      %c64_i32 = arith.constant 64 : i32
      %8 = arith.addi %c64_i32, %7 : i32
      %9 = arith.addi %8, %6 : i32
      %10 = arith.index_cast %9 : i32 to index
      %11 = memref.load %arg3[%10] : memref<256xi32, #tpu.memory_space<smem>>
      %12 = arith.index_cast %9 : i32 to index
      %13 = memref.load %arg4[%12] : memref<256xi32, #tpu.memory_space<smem>>
      %14 = arith.subi %13, %11 : i32
      %15 = arith.addi %11, %14 : i32
      %c1_i32_16 = arith.constant 1 : i32
      %16 = scf.for %arg8 = %11 to %15 step %c1_i32_16 iter_args(%arg9 = %0) -> (vector<1x32xf32>)  : i32 {
        %19 = arith.index_cast %arg8 : i32 to index
        %20 = memref.load %arg1[%19] : memref<475xi32, #tpu.memory_space<smem>>
        %21 = arith.index_cast %20 : i32 to index
        %c0 = arith.constant 0 : index
        %22 = vector.load %arg5[%21, %c0] : memref<280x32xf32, #tpu.memory_space<vmem>>, vector<1x32xf32>
        %23 = arith.addf %arg9, %22 : vector<1x32xf32>
        scf.yield %23 : vector<1x32xf32>
      }
      %17 = arith.index_cast %6 : i32 to index
      %c32 = arith.constant 32 : index
      %18 = vector.load %arg6[%17, %c32] : memref<16x128xf32, #tpu.memory_space<vmem>>, vector<1x32xf32>
      tpu.vector_store %arg6[%17, %c32], %16 {strides = array<i32>} : memref<16x128xf32, #tpu.memory_space<vmem>>, vector<1x32xf32>,
    }
    %c16_i32_4 = arith.constant 16 : i32
    %c0_i32_5 = arith.constant 0 : i32
    %c16_i32_6 = arith.constant 16 : i32
    %3 = arith.addi %c0_i32_5, %c16_i32_6 : i32
    %c1_i32_7 = arith.constant 1 : i32
    scf.for %arg7 = %c0_i32_5 to %3 step %c1_i32_7  : i32 {
      %c1_i32_13 = arith.constant 1 : i32
      %5 = arith.muli %arg7, %c1_i32_13 : i32
      %c0_i32_14 = arith.constant 0 : i32
      %6 = arith.addi %c0_i32_14, %5 : i32
      %c16_i32_15 = arith.constant 16 : i32
      %7 = arith.muli %arg0, %c16_i32_15 : i32
      %c128_i32 = arith.constant 128 : i32
      %8 = arith.addi %c128_i32, %7 : i32
      %9 = arith.addi %8, %6 : i32
      %10 = arith.index_cast %9 : i32 to index
      %11 = memref.load %arg3[%10] : memref<256xi32, #tpu.memory_space<smem>>
      %12 = arith.index_cast %9 : i32 to index
      %13 = memref.load %arg4[%12] : memref<256xi32, #tpu.memory_space<smem>>
      %14 = arith.subi %13, %11 : i32
      %15 = arith.addi %11, %14 : i32
      %c1_i32_16 = arith.constant 1 : i32
      %16 = scf.for %arg8 = %11 to %15 step %c1_i32_16 iter_args(%arg9 = %0) -> (vector<1x32xf32>)  : i32 {
        %19 = arith.index_cast %arg8 : i32 to index
        %20 = memref.load %arg1[%19] : memref<475xi32, #tpu.memory_space<smem>>
        %21 = arith.index_cast %20 : i32 to index
        %c0 = arith.constant 0 : index
        %22 = vector.load %arg5[%21, %c0] : memref<280x32xf32, #tpu.memory_space<vmem>>, vector<1x32xf32>
        %23 = arith.addf %arg9, %22 : vector<1x32xf32>
        scf.yield %23 : vector<1x32xf32>
      }
      %17 = arith.index_cast %6 : i32 to index
      %c64 = arith.constant 64 : index
      %18 = vector.load %arg6[%17, %c64] : memref<16x128xf32, #tpu.memory_space<vmem>>, vector<1x32xf32>
      tpu.vector_store %arg6[%17, %c64], %16 {strides = array<i32>} : memref<16x128xf32, #tpu.memory_space<vmem>>, vector<1x32xf32>,
    }
    %c16_i32_8 = arith.constant 16 : i32
    %c0_i32_9 = arith.constant 0 : i32
    %c16_i32_10 = arith.constant 16 : i32
    %4 = arith.addi %c0_i32_9, %c16_i32_10 : i32
    %c1_i32_11 = arith.constant 1 : i32
    scf.for %arg7 = %c0_i32_9 to %4 step %c1_i32_11  : i32 {
      %c1_i32_13 = arith.constant 1 : i32
      %5 = arith.muli %arg7, %c1_i32_13 : i32
      %c0_i32_14 = arith.constant 0 : i32
      %6 = arith.addi %c0_i32_14, %5 : i32
      %c16_i32_15 = arith.constant 16 : i32
      %7 = arith.muli %arg0, %c16_i32_15 : i32
      %c192_i32 = arith.constant 192 : i32
      %8 = arith.addi %c192_i32, %7 : i32
      %9 = arith.addi %8, %6 : i32
      %10 = arith.index_cast %9 : i32 to index
      %11 = memref.load %arg3[%10] : memref<256xi32, #tpu.memory_space<smem>>
      %12 = arith.index_cast %9 : i32 to index
      %13 = memref.load %arg4[%12] : memref<256xi32, #tpu.memory_space<smem>>
      %14 = arith.subi %13, %11 : i32
      %15 = arith.addi %11, %14 : i32
      %c1_i32_16 = arith.constant 1 : i32
      %16 = scf.for %arg8 = %11 to %15 step %c1_i32_16 iter_args(%arg9 = %0) -> (vector<1x32xf32>)  : i32 {
        %19 = arith.index_cast %arg8 : i32 to index
        %20 = memref.load %arg1[%19] : memref<475xi32, #tpu.memory_space<smem>>
        %21 = arith.index_cast %20 : i32 to index
        %c0 = arith.constant 0 : index
        %22 = vector.load %arg5[%21, %c0] : memref<280x32xf32, #tpu.memory_space<vmem>>, vector<1x32xf32>
        %23 = arith.addf %arg9, %22 : vector<1x32xf32>
        scf.yield %23 : vector<1x32xf32>
      }
      %17 = arith.index_cast %6 : i32 to index
      %c96 = arith.constant 96 : index
      %18 = vector.load %arg6[%17, %c96] : memref<16x128xf32, #tpu.memory_space<vmem>>, vector<1x32xf32>
      tpu.vector_store %arg6[%17, %c96], %16 {strides = array<i32>} : memref<16x128xf32, #tpu.memory_space<vmem>>, vector<1x32xf32>,
    }
    %c16_i32_12 = arith.constant 16 : i32
    return
  }
  func.func @transform_0(%arg0: i32, %arg1: memref<475xi32, #tpu.memory_space<smem>>, %arg2: memref<5xi32, #tpu.memory_space<smem>>, %arg3: memref<256xi32, #tpu.memory_space<smem>>, %arg4: memref<256xi32, #tpu.memory_space<smem>>) -> (i32, i32) {
    %c0_i32 = arith.constant 0 : i32
    %c0_i32_0 = arith.constant 0 : i32
    %c0_i32_1 = arith.constant 0 : i32
    return %c0_i32, %c0_i32_0 : i32, i32
  }
  func.func @transform_1(%arg0: i32, %arg1: memref<475xi32, #tpu.memory_space<smem>>, %arg2: memref<5xi32, #tpu.memory_space<smem>>, %arg3: memref<256xi32, #tpu.memory_space<smem>>, %arg4: memref<256xi32, #tpu.memory_space<smem>>) -> (i32, i32) {
    %c0_i32 = arith.constant 0 : i32
    %c0_i32_0 = arith.constant 0 : i32
    return %arg0, %c0_i32 : i32, i32
  }
}

</mosaic_0001>

<llo_original>
// kernel: tpu_custom_call.1
$region0: #{tpu_custom_call.1}
  #allocation0 [shape = 'u32[]', space=smem, size = 0x4, offset = 0x4, fixed_abs, tag = 'smem constant byte address 0x4 - core index']
  #allocation1 [shape = 'u32[144,128]{1,0:T(1,128)}', space=vmem, size = 0x12000, scoped, tag = 'internal scratch']
  #allocation2 [shape = 's32[1]{0}', space=sflag, size = 0x4, scoped, tag = 'scoped memory for tpu_custom_call.1']
  #allocation3 [shape = 'u8[2048]{0}', space=smem, size = 0x800, scoped, tag = 'prefetched SMEM operand 0']
  #allocation4 [shape = 'u8[512]{0}', space=smem, size = 0x200, scoped, tag = 'prefetched SMEM operand 1']
  #allocation5 [shape = 'u8[1024]{0}', space=smem, size = 0x400, scoped, tag = 'prefetched SMEM operand 2']
  #allocation6 [shape = 'u8[1024]{0}', space=smem, size = 0x400, scoped, tag = 'prefetched SMEM operand 3']
  %s0 = inlined_call_operand.vmem [shape: s32[475], index: 0, kind: input, shape index: {}]
  %s1 = inlined_call_operand.vmem [shape: s32[5], index: 1, kind: input, shape index: {}]
  %s2 = inlined_call_operand.vmem [shape: s32[256], index: 2, kind: input, shape index: {}]
  %s3 = inlined_call_operand.vmem [shape: s32[256], index: 3, kind: input, shape index: {}]
  %s4 = inlined_call_operand.vmem [shape: f32[280,32], index: 4, kind: input, shape index: {}]
  %s5 = inlined_call_operand.hbm [shape: f32[64,128], index: 5, kind: output, shape index: {}]
  %s6 = sld [smem:[#allocation0]]
  $region93: #{tpu_custom_call.1} parent=0
    _
  %s8 = ssub.s32 1, %s6
  %s9 = scalar_select 0, %s8, %s6
  %s10 = sshll.u32 %s0, 4
  %s11 = int_to_ptr.vmem [resolvable:$true] %s10
  %13 = dma.vmem_to_smem %s11, 64, [#allocation3], [#allocation2]
  %s14 = sshll.u32 %s1, 4
  %s15 = int_to_ptr.vmem [resolvable:$true] %s14
  %17 = dma.vmem_to_smem %s15, 16, [#allocation4], [#allocation2]
  %s18 = sshll.u32 %s2, 4
  %s19 = int_to_ptr.vmem [resolvable:$true] %s18
  %21 = dma.vmem_to_smem %s19, 32, [#allocation5], [#allocation2]
  %s22 = sshll.u32 %s3, 4
  %s23 = int_to_ptr.vmem [resolvable:$true] %s22
  %25 = dma.vmem_to_smem %s23, 32, [#allocation6], [#allocation2]
  %26 = dma.done [#allocation2], 144
  %27 = sfence
  $region1: #{tpu_custom_call.1} parent=0
    #allocation7 [shape = 'u8[16384]{0}', space=vmem, size = 0x4000, scoped, tag = 'output window, operand 0']
    #allocation8 [shape = 's32[2]{0}', space=sflag, size = 0x8, scoped, tag = 'scoped memory for tpu_custom_call.1']
    %28 = vsyncpa [#allocation8], 0
    %s29 = scalar_lea.sflag [#allocation8], 1
    %30 = vsyncpa %s29, 0
    loop: start=0, step=1, limit=6
    $region2: #{tpu_custom_call.1} parent=1 // loop_pre_header
      _
    $region3: #{tpu_custom_call.1} parent=1 // loop_header
      %s32 = sphi 0, %s36
      %p33 = scmp.ge.s32.totalorder %s32, 6
      %s40 = sphi 0, %s40
      %s42 = sphi 0, %s40
      %s43 = sphi 0, %s42
      %s57 = sphi 0, %s43
      %s63 = sphi 0, %s65
      %s66 = sphi 0, %s63
      %s67 = sphi 0, %s66
      %s83 = sphi 0, %s67
    $region4: #{tpu_custom_call.1} parent=1 // loop_header_branch
      %35 = sbr.rel (%p33) target = $region8
    $region5: #{tpu_custom_call.1} parent=1 // loop_body
      %s37 = ssub.s32 %s32, 1
      %s38 = ssub.s32 %s32, 2
      %s39 = sadd.s32 %s32, 1
      %s41 = sadd.s32 %s40, 1
      %p44 = scmp.eq.s32.totalorder %s32, 3
      %p45 = scmp.ne.s32.totalorder %s40, %s42
      %p46 = scmp.eq.s32.totalorder %s32, 0
      %p47 = por %p45, %p46
      %p48 = scmp.ne.s32.totalorder %s40, %s42
      %p49 = scmp.eq.s32.totalorder %s37, 3
      %p50 = por %p48, %p49
      %p51 = scmp.ne.s32.totalorder %s42, %s43
      %p52 = scmp.eq.s32.totalorder %s37, 0
      %p53 = por %p51, %p52
      %p54 = scmp.ne.s32.totalorder %s42, %s43
      %p55 = scmp.eq.s32.totalorder %s38, 3
      %p56 = por %p54, %p55
      %p58 = scmp.ne.s32.totalorder %s43, %s57
      %p59 = scmp.eq.s32.totalorder %s38, 0
      %p60 = por %p58, %p59
      %s61 = ssub.s32 %s32, %s39
      %p62 = scmp.eq.s32.totalorder %s61, 0
      %s64 = sadd.s32 %s63, 1
      %s65 = scalar_select %p62, %s63, %s64
      %p68 = pneg %p62
      %p69 = scmp.eq.s32.totalorder %s32, 3
      %p70 = por %p68, %p69
      %p71 = scmp.ne.s32.totalorder %s63, %s66
      %p72 = scmp.eq.s32.totalorder %s32, 0
      %p73 = por %p71, %p72
      %p74 = scmp.ne.s32.totalorder %s63, %s66
      %p75 = scmp.eq.s32.totalorder %s37, 3
      %p76 = por %p74, %p75
      %p77 = scmp.ne.s32.totalorder %s66, %s67
      %p78 = scmp.eq.s32.totalorder %s37, 0
      %p79 = por %p77, %p78
      %p80 = scmp.ne.s32.totalorder %s66, %s67
      %p81 = scmp.eq.s32.totalorder %s38, 3
      %p82 = por %p80, %p81
      %p84 = scmp.ne.s32.totalorder %s67, %s83
      %p85 = scmp.eq.s32.totalorder %s38, 0
      %p86 = por %p84, %p85
      %p87 = scmp.le.s32.totalorder 1, %s32
      %p88 = scmp.lt.s32.totalorder %s32, 5
      %p89 = pnand %p87, %p88
      %p90 = pneg %p89
      // Predicated region
      $region9: #{tpu_custom_call.1} parent=5 // pred_check
        _
      $region10: #{tpu_custom_call.1} parent=5 // pred_check_branch
        %92 = sbr.rel (%p89) target = $region12
      $region11: #{tpu_custom_call.1} parent=5 // pred_region
        %s93 = ssub.s32 %s32, 1
        // Predicated region
        $region13: #{tpu_custom_call.1} parent=11 // pred_check
          %p94 = pneg %p53
        $region14: #{tpu_custom_call.1} parent=11 // pred_check_branch
          %96 = sbr.rel (%p94) target = $region16
        $region15: #{tpu_custom_call.1} parent=11 // pred_region
          _
        $region16: #{tpu_custom_call.1} parent=11 // pred_fallthru
          _
      $region12: #{tpu_custom_call.1} parent=5 // pred_fallthru
        _
      %p97 = scmp.lt.s32.totalorder %s32, 4
      // Predicated region
      $region17: #{tpu_custom_call.1} parent=5 // pred_check
        %p98 = pneg %p97
      $region18: #{tpu_custom_call.1} parent=5 // pred_check_branch
        %100 = sbr.rel (%p98) target = $region20
      $region19: #{tpu_custom_call.1} parent=5 // pred_region
        _
      $region20: #{tpu_custom_call.1} parent=5 // pred_fallthru
        _
      %p101 = scmp.le.s32.totalorder 1, %s32
      %p102 = scmp.lt.s32.totalorder %s32, 5
      %p103 = pnand %p101, %p102
      %p104 = pneg %p103
      // Predicated region
      $region21: #{tpu_custom_call.1} parent=5 // pred_check
        _
      $region22: #{tpu_custom_call.1} parent=5 // pred_check_branch
        %106 = sbr.rel (%p103) target = $region24
      $region23: #{tpu_custom_call.1} parent=5 // pred_region
        %s107 = ssub.s32 %s32, 1
        %p108 = pneg %p53
        %p109 = pneg %p50
        %p110 = pneg %p79
        %p111 = pneg %p76
        %s112 = sand.u32 %s66, 1
        %s113 = scalar_lea.sflag [#allocation8], %s112
        %s114 = sand.u32 %s66, 1
        %s115 = smul.addr %s114, 16
        %s116 = scalar_lea.vmem [#allocation7], %s115
        %s117 = smul.u32 2, %s37
        loop: start=0, step=1, limit=16
        $region25: #{tpu_custom_call.1} parent=23 // loop_pre_header
          _
        $region26: #{tpu_custom_call.1} parent=23 // loop_header
          %s119 = sphi 0, %s123
          %p120 = scmp.ge.s32.totalorder %s119, 16
        $region27: #{tpu_custom_call.1} parent=23 // loop_header_branch
          %122 = sbr.rel (%p120) target = $region31
        $region28: #{tpu_custom_call.1} parent=23 // loop_body
          %s124 = smul.u32 %s37, 16
          %s125 = sadd.s32 %s124, %s119
          %s126 = sld [smem:[#allocation5 + %s125]]
          %s127 = sld [smem:[#allocation6 + %s125]]
          // While loop
          $region32: #{tpu_custom_call.1} parent=28 // loop_pre_header
            _
          $region33: #{tpu_custom_call.1} parent=28 // loop_header
            %s129 = sphi %s126, %s131
            %p130 = scmp.ge.s32.totalorder %s129, %s127
            %v134 = vphi 0.0, %v138
          $region34: #{tpu_custom_call.1} parent=28 // loop_header_branch
            %133 = sbr.rel (%p130) target = $region38
          $region35: #{tpu_custom_call.1} parent=28 // loop_body
            %s135 = sld [smem:[#allocation3 + %s129]]
            %s136 = scalar_lea.vmem %s4, %s135
            %v137 = vld [vmem:[%s136] sm:$0x1]
            %v138 = vadd.f32 %v134, %v137
          $region36: #{tpu_custom_call.1} parent=28 // loop_footer
            %s131 = sadd.s32 %s129, 1
          $region37: #{tpu_custom_call.1} parent=28 // loop_footer_branch
            %128 = sbr.rel target = $region33
          $region38: #{tpu_custom_call.1} parent=28 // loop_exit
            _
          %s139 = scalar_lea.vmem %s116, %s119 [#allocation7]
          %vm140 = vcmask 253952
          %141 = vst.msk [vmem:[%s139] sm:$0x1] %vm140, %v134
        $region29: #{tpu_custom_call.1} parent=23 // loop_footer
          %s123 = sadd.s32 1, %s119
        $region30: #{tpu_custom_call.1} parent=23 // loop_footer_branch
          %118 = sbr.rel target = $region26
        $region31: #{tpu_custom_call.1} parent=23 // loop_exit
          _
        loop: start=0, step=1, limit=16
        $region39: #{tpu_custom_call.1} parent=23 // loop_pre_header
          _
        $region40: #{tpu_custom_call.1} parent=23 // loop_header
          %s143 = sphi 0, %s147
          %p144 = scmp.ge.s32.totalorder %s143, 16
        $region41: #{tpu_custom_call.1} parent=23 // loop_header_branch
          %146 = sbr.rel (%p144) target = $region45
        $region42: #{tpu_custom_call.1} parent=23 // loop_body
          %s148 = smul.u32 %s37, 16
          %s149 = sadd.s32 %s148, 64
          %s150 = sadd.s32 %s149, %s143
          %s151 = sld [smem:[#allocation5 + %s150]]
          %s152 = sld [smem:[#allocation6 + %s150]]
          // While loop
          $region46: #{tpu_custom_call.1} parent=42 // loop_pre_header
            _
          $region47: #{tpu_custom_call.1} parent=42 // loop_header
            %s154 = sphi %s151, %s156
            %p155 = scmp.ge.s32.totalorder %s154, %s152
            %v159 = vphi 0.0, %v163
          $region48: #{tpu_custom_call.1} parent=42 // loop_header_branch
            %158 = sbr.rel (%p155) target = $region52
          $region49: #{tpu_custom_call.1} parent=42 // loop_body
            %s160 = sld [smem:[#allocation3 + %s154]]
            %s161 = scalar_lea.vmem %s4, %s160
            %v162 = vld [vmem:[%s161] sm:$0x1]
            %v163 = vadd.f32 %v159, %v162
          $region50: #{tpu_custom_call.1} parent=42 // loop_footer
            %s156 = sadd.s32 %s154, 1
          $region51: #{tpu_custom_call.1} parent=42 // loop_footer_branch
            %153 = sbr.rel target = $region47
          $region52: #{tpu_custom_call.1} parent=42 // loop_exit
            _
          %165 = vrot.lane.b32.xlu0 %v159, 32
          %v166 = vpop.permute.xlu0 %165
          %s168 = scalar_lea.vmem %s116, %s143 [#allocation7]
          %vm169 = vcmask 516352
          %170 = vst.msk [vmem:[%s168] sm:$0x1] %vm169, %v166
        $region43: #{tpu_custom_call.1} parent=23 // loop_footer
          %s147 = sadd.s32 1, %s143
        $region44: #{tpu_custom_call.1} parent=23 // loop_footer_branch
          %142 = sbr.rel target = $region40
        $region45: #{tpu_custom_call.1} parent=23 // loop_exit
          _
        loop: start=0, step=1, limit=16
        $region53: #{tpu_custom_call.1} parent=23 // loop_pre_header
          _
        $region54: #{tpu_custom_call.1} parent=23 // loop_header
          %s172 = sphi 0, %s176
          %p173 = scmp.ge.s32.totalorder %s172, 16
        $region55: #{tpu_custom_call.1} parent=23 // loop_header_branch
          %175 = sbr.rel (%p173) target = $region59
        $region56: #{tpu_custom_call.1} parent=23 // loop_body
          %s177 = smul.u32 %s37, 16
          %s178 = sadd.s32 %s177, 128
          %s179 = sadd.s32 %s178, %s172
          %s180 = sld [smem:[#allocation5 + %s179]]
          %s181 = sld [smem:[#allocation6 + %s179]]
          // While loop
          $region60: #{tpu_custom_call.1} parent=56 // loop_pre_header
            _
          $region61: #{tpu_custom_call.1} parent=56 // loop_header
            %s183 = sphi %s180, %s185
            %p184 = scmp.ge.s32.totalorder %s183, %s181
            %v188 = vphi 0.0, %v192
          $region62: #{tpu_custom_call.1} parent=56 // loop_header_branch
            %187 = sbr.rel (%p184) target = $region66
          $region63: #{tpu_custom_call.1} parent=56 // loop_body
            %s189 = sld [smem:[#allocation3 + %s183]]
            %s190 = scalar_lea.vmem %s4, %s189
            %v191 = vld [vmem:[%s190] sm:$0x1]
            %v192 = vadd.f32 %v188, %v191
          $region64: #{tpu_custom_call.1} parent=56 // loop_footer
            %s185 = sadd.s32 %s183, 1
          $region65: #{tpu_custom_call.1} parent=56 // loop_footer_branch
            %182 = sbr.rel target = $region61
          $region66: #{tpu_custom_call.1} parent=56 // loop_exit
            _
          %194 = vrot.lane.b32.xlu0 %v188, 64
          %v195 = vpop.permute.xlu0 %194
          %s197 = scalar_lea.vmem %s116, %s172 [#allocation7]
          %vm198 = vcmask 778752
          %199 = vst.msk [vmem:[%s197] sm:$0x1] %vm198, %v195
        $region57: #{tpu_custom_call.1} parent=23 // loop_footer
          %s176 = sadd.s32 1, %s172
        $region58: #{tpu_custom_call.1} parent=23 // loop_footer_branch
          %171 = sbr.rel target = $region54
        $region59: #{tpu_custom_call.1} parent=23 // loop_exit
          _
        loop: start=0, step=1, limit=16
        $region67: #{tpu_custom_call.1} parent=23 // loop_pre_header
          _
        $region68: #{tpu_custom_call.1} parent=23 // loop_header
          %s201 = sphi 0, %s205
          %p202 = scmp.ge.s32.totalorder %s201, 16
        $region69: #{tpu_custom_call.1} parent=23 // loop_header_branch
          %204 = sbr.rel (%p202) target = $region73
        $region70: #{tpu_custom_call.1} parent=23 // loop_body
          %s206 = smul.u32 %s37, 16
          %s207 = sadd.s32 %s206, 192
          %s208 = sadd.s32 %s207, %s201
          %s209 = sld [smem:[#allocation5 + %s208]]
          %s210 = sld [smem:[#allocation6 + %s208]]
          // While loop
          $region74: #{tpu_custom_call.1} parent=70 // loop_pre_header
            _
          $region75: #{tpu_custom_call.1} parent=70 // loop_header
            %s212 = sphi %s209, %s214
            %p213 = scmp.ge.s32.totalorder %s212, %s210
            %v217 = vphi 0.0, %v221
          $region76: #{tpu_custom_call.1} parent=70 // loop_header_branch
            %216 = sbr.rel (%p213) target = $region80
          $region77: #{tpu_custom_call.1} parent=70 // loop_body
            %s218 = sld [smem:[#allocation3 + %s212]]
            %s219 = scalar_lea.vmem %s4, %s218
            %v220 = vld [vmem:[%s219] sm:$0x1]
            %v221 = vadd.f32 %v217, %v220
          $region78: #{tpu_custom_call.1} parent=70 // loop_footer
            %s214 = sadd.s32 %s212, 1
          $region79: #{tpu_custom_call.1} parent=70 // loop_footer_branch
            %211 = sbr.rel target = $region75
          $region80: #{tpu_custom_call.1} parent=70 // loop_exit
            _
          %223 = vrot.lane.b32.xlu0 %v217, 96
          %v224 = vpop.permute.xlu0 %223
          %s226 = scalar_lea.vmem %s116, %s201 [#allocation7]
          %vm227 = vcmask 1041152
          %228 = vst.msk [vmem:[%s226] sm:$0x1] %vm227, %v224
        $region71: #{tpu_custom_call.1} parent=23 // loop_footer
          %s205 = sadd.s32 1, %s201
        $region72: #{tpu_custom_call.1} parent=23 // loop_footer_branch
          %200 = sbr.rel target = $region68
        $region73: #{tpu_custom_call.1} parent=23 // loop_exit
          _
        %s229 = sand.u32 %s66, 1
        %s230 = scalar_lea.sflag [#allocation8], %s229
        %s231 = sand.u32 %s66, 1
        %s232 = smul.addr %s231, 16
        %s233 = scalar_lea.vmem [#allocation7], %s232
        // Predicated region
        $region81: #{tpu_custom_call.1} parent=23 // pred_check
          %p234 = pneg %p76
        $region82: #{tpu_custom_call.1} parent=23 // pred_check_branch
          %236 = sbr.rel (%p234) target = $region84
        $region83: #{tpu_custom_call.1} parent=23 // pred_region
          %s237 = smul.u32 2, %s37
          %s239 = ssub.s32 256, 256
          %240 = vsyncadd %s230, %s239
          %s241 = smul.addr %s237, 128
          %s242 = scalar_lea.hbm %s5, %s241
          %s243 = sshll.u32 %s233, 4
          %s244 = int_to_ptr.vmem [resolvable:$true] %s243
          %249 = dma.vmem_to_hbm [thread:$0]  %s244, 256, %s242, %s230, 128, 128, 8
        $region84: #{tpu_custom_call.1} parent=23 // pred_fallthru
          _
      $region24: #{tpu_custom_call.1} parent=5 // pred_fallthru
        _
      %p250 = scmp.le.s32.totalorder 2, %s32
      // Predicated region
      $region85: #{tpu_custom_call.1} parent=5 // pred_check
        %p251 = pneg %p250
      $region86: #{tpu_custom_call.1} parent=5 // pred_check_branch
        %253 = sbr.rel (%p251) target = $region88
      $region87: #{tpu_custom_call.1} parent=5 // pred_region
        %s254 = ssub.s32 %s32, 2
        // Predicated region
        $region89: #{tpu_custom_call.1} parent=87 // pred_check
          %p255 = pneg %p82
        $region90: #{tpu_custom_call.1} parent=87 // pred_check_branch
          %257 = sbr.rel (%p255) target = $region92
        $region91: #{tpu_custom_call.1} parent=87 // pred_region
          %s258 = sand.u32 %s67, 1
          %s259 = scalar_lea.sflag [#allocation8], %s258
          %s260 = sand.u32 %s67, 1
          %s261 = smul.addr %s260, 16
          %s262 = scalar_lea.vmem [#allocation7], %s261
          %263 = dma.done %s259, 256
        $region92: #{tpu_custom_call.1} parent=87 // pred_fallthru
          _
      $region88: #{tpu_custom_call.1} parent=5 // pred_fallthru
        _
    $region6: #{tpu_custom_call.1} parent=1 // loop_footer
      %s36 = sadd.s32 1, %s32
    $region7: #{tpu_custom_call.1} parent=1 // loop_footer_branch
      %31 = sbr.rel target = $region3
    $region8: #{tpu_custom_call.1} parent=1 // loop_exit
      _
    %264 = vsyncpa [#allocation8], 1
    %s265 = scalar_lea.sflag [#allocation8], 1
    %266 = vsyncpa %s265, 1

</llo_original>
